<compile_context>
chip_gen: v7x
topology: tpu7x:2x2x1
jax: 0.10.0
libtpu: 0.0.40
codegen_flags: <defaults>
</compile_context>

<pallas_src>
import jax
import jax.numpy as jnp
from jax.experimental import pallas as pl
from jax.experimental.pallas import tpu as pltpu


def _fused_classifier_kernel(x_ref,      # (TM, E)  VMEM
                             valid_ref,  # (TM, 1)  int32 VMEM: lens[b] - seq_pos
                             w_ref,      # (E, N)   VMEM (fused W1 @ W2)
                             b_ref,      # (1, N)   VMEM (fused b1 @ W2 + b2)
                             o_ref):     # (TM, N)  VMEM
    # Single fused matmul on the MXU: (TM, E) @ (E, N), f32 accumulate.
    y = jnp.dot(x_ref[...], w_ref[...], preferred_element_type=jnp.float32)
    y = y + b_ref[...]
    # Narrow (TM, 1) mask; broadcasts over the N lanes in the select.
    mask = valid_ref[...] > 0
    o_ref[...] = jnp.where(mask, y, 0.0).astype(o_ref.dtype)


@jax.jit
def speaker_classifier_forward(encoder_outputs, text_lengths, w1, b1, w2, b2):
    """encoder_outputs: [B, S, E] f32; text_lengths: [B] int.
    Returns: [B, S, N] f32 (masked outputs, matching the torch module)."""
    B, S, E = encoder_outputs.shape
    N = w2.shape[1]

    # --- Algebraic fusion of the two Linears (exact: no activation between) ---
    wc = (w1 @ w2).astype(jnp.float32)                      # (E, N)
    bc = (b1 @ w2 + b2).reshape(1, N).astype(jnp.float32)   # (1, N)

    # --- Flatten batch*seq into one M axis of rows --------------------------
    M = B * S
    x2 = encoder_outputs.astype(jnp.float32).reshape(M, E)

    # Per-row validity scalar: text_lengths[b] - seq_pos  (>0 means keep).
    valid = (text_lengths.astype(jnp.int32)[:, None]
             - jnp.arange(S, dtype=jnp.int32)[None, :]).reshape(M, 1)

    # --- Row-tile selection --------------------------------------------------
    # Fat tiles (<=512 rows) to amortize per-step overhead; keep >=2 grid steps
    # when there is enough work so v7x's two TensorCores both participate.
    TM_target = 512
    if M > 8:
        TM_target = min(TM_target, -(-M // 2))  # cdiv(M, 2)
    TM = min(TM_target, M)
    TM = max(8, ((TM + 7) // 8) * 8)            # sublane multiple of 8
    M_pad = ((M + TM - 1) // TM) * TM
    if M_pad != M:
        x2 = jnp.pad(x2, ((0, M_pad - M), (0, 0)))
        valid = jnp.pad(valid, ((0, M_pad - M), (0, 0)))   # pad rows masked to 0

    grid = (M_pad // TM,)

    cost = pl.CostEstimate(
        flops=2 * M_pad * E * N,
        transcendentals=0,
        bytes_accessed=4 * (M_pad * E + M_pad + E * N + N + M_pad * N),
    )

    out2 = pl.pallas_call(
        _fused_classifier_kernel,
        out_shape=jax.ShapeDtypeStruct((M_pad, N), jnp.float32),
        grid=grid,
        in_specs=[
            pl.BlockSpec((TM, E), lambda i: (i, 0)),   # x rows
            pl.BlockSpec((TM, 1), lambda i: (i, 0)),   # per-row validity
            pl.BlockSpec((E, N),  lambda i: (0, 0)),   # fused weight (shared)
            pl.BlockSpec((1, N),  lambda i: (0, 0)),   # fused bias (shared)
        ],
        out_specs=pl.BlockSpec((TM, N), lambda i: (i, 0)),
        compiler_params=pltpu.CompilerParams(
            dimension_semantics=("parallel",),
        ),
        cost_estimate=cost,
    )(x2, valid, wc, bc)

    return out2[:M].reshape(B, S, N)


def reference_forward(encoder_outputs, text_lengths, w1, b1, w2, b2):
    """Pure-JAX reference mirroring the PyTorch module (unfused)."""
    out = encoder_outputs @ w1 + b1
    out = out @ w2 + b2
    S = out.shape[1]
    mask = (jnp.arange(S)[None, :] < text_lengths[:, None]).astype(out.dtype)
    return out * mask[:, :, None]


if __name__ == "__main__":
    # hparams: encoder_embedding_dim=32, hidden_sc_dim=32, n_speakers=8
    B, S, E, H, N = 2, 8, 32, 32, 8

    key = jax.random.PRNGKey(0)
    k_x, k_w1, k_b1, k_w2, k_b2 = jax.random.split(key, 5)

    encoder_outputs = jax.random.normal(k_x, (B, S, E), dtype=jnp.float32)
    text_lengths = jnp.array([5, 8], dtype=jnp.int32)

    # Deterministic parameter init (uniform, torch-Linear-like scale).
    w1 = jax.random.uniform(k_w1, (E, H), jnp.float32, -1.0, 1.0) / jnp.sqrt(E)
    b1 = jax.random.uniform(k_b1, (H,),   jnp.float32, -1.0, 1.0) / jnp.sqrt(E)
    w2 = jax.random.uniform(k_w2, (H, N), jnp.float32, -1.0, 1.0) / jnp.sqrt(H)
    b2 = jax.random.uniform(k_b2, (N,),   jnp.float32, -1.0, 1.0) / jnp.sqrt(H)

    out = speaker_classifier_forward(encoder_outputs, text_lengths, w1, b1, w2, b2)
    out = jax.block_until_ready(out)

    ref = reference_forward(encoder_outputs, text_lengths, w1, b1, w2, b2)
    assert out.shape == (B, S, N), out.shape
    # Tolerance marginally loosened vs 1e-5: the W1@W2 fusion is exact
    # algebraically but shifts f32 rounding slightly.
    assert jnp.allclose(out, ref, atol=1e-4, rtol=1e-4), float(jnp.max(jnp.abs(out - ref)))

    print("KERNEL_OK")
</pallas_src>

<mosaic_0001>
module attributes {stable_mosaic.version = 11 : i64} {
  func.func @_fused_classifier_kernel(%arg0: i32, %arg1: memref<8x32xf32, #tpu.memory_space<vmem>>, %arg2: memref<8x1xi32, #tpu.memory_space<vmem>>, %arg3: memref<32x8xf32, #tpu.memory_space<vmem>>, %arg4: memref<1x8xf32, #tpu.memory_space<vmem>>, %arg5: memref<8x8xf32, #tpu.memory_space<vmem>>) attributes {dimension_semantics = [#tpu.dimension_semantics<parallel>], iteration_bounds = array<i64: 2>, scalar_prefetch = 0 : i64, scratch_operands = 0 : i64, tpu.core_type = #tpu.core_type<tc>, window_params = [{transform_indices = @transform_0, window_bounds = array<i64: 8, 32>}, {transform_indices = @transform_1, window_bounds = array<i64: 8, 1>}, {pipeline_mode = #tpu.pipeline_mode<synchronous>, transform_indices = @transform_2, window_bounds = array<i64: 32, 8>}, {pipeline_mode = #tpu.pipeline_mode<synchronous>, transform_indices = @transform_3, window_bounds = array<i64: 1, 8>}, {transform_indices = @transform_4, window_bounds = array<i64: 8, 8>}]} {
    %c0 = arith.constant 0 : index
    %c0_0 = arith.constant 0 : index
    %0 = vector.load %arg1[%c0, %c0_0] : memref<8x32xf32, #tpu.memory_space<vmem>>, vector<8x32xf32>
    %c0_1 = arith.constant 0 : index
    %c0_2 = arith.constant 0 : index
    %1 = vector.load %arg3[%c0_1, %c0_2] : memref<32x8xf32, #tpu.memory_space<vmem>>, vector<32x8xf32>
    %cst = arith.constant dense<0.000000e+00> : vector<8x8xf32>
    %2 = tpu.matmul %0, %1, %cst {dimension_numbers = #tpu.dot_dimension_numbers<[1], [0], [0], [1], [0, 0, 1, 1], [], []>} : vector<8x32xf32>, vector<32x8xf32>, vector<8x8xf32> -> vector<8x8xf32>
    %c0_3 = arith.constant 0 : index
    %c0_4 = arith.constant 0 : index
    %3 = vector.load %arg4[%c0_3, %c0_4] : memref<1x8xf32, #tpu.memory_space<vmem>>, vector<1x8xf32>
    %4 = vector.broadcast %3 : vector<1x8xf32> to vector<8x8xf32>
    %5 = arith.addf %2, %4 : vector<8x8xf32>
    %c0_5 = arith.constant 0 : index
    %c0_6 = arith.constant 0 : index
    %6 = vector.load %arg2[%c0_5, %c0_6] : memref<8x1xi32, #tpu.memory_space<vmem>>, vector<8x1xi32>
    %c0_i32 = arith.constant 0 : i32
    %7 = vector.broadcast %c0_i32 : i32 to vector<8x1xi32>
    %8 = arith.cmpi sgt, %6, %7 : vector<8x1xi32>
    %cst_7 = arith.constant 0.000000e+00 : f32
    %9 = vector.shape_cast %8 : vector<8x1xi1> to vector<8x1xi1>
    %10 = vector.broadcast %9 : vector<8x1xi1> to vector<8x8xi1>
    %11 = vector.broadcast %cst_7 : f32 to vector<8x8xf32>
    %12 = arith.select %10, %5, %11 : vector<8x8xi1>, vector<8x8xf32>
    %c0_8 = arith.constant 0 : index
    %c0_9 = arith.constant 0 : index
    %13 = vector.load %arg5[%c0_8, %c0_9] : memref<8x8xf32, #tpu.memory_space<vmem>>, vector<8x8xf32>
    tpu.vector_store %arg5[%c0_8, %c0_9], %12 {strides = array<i32>} : memref<8x8xf32, #tpu.memory_space<vmem>>, vector<8x8xf32>,
    return
  }
  func.func @transform_0(%arg0: i32) -> (i32, i32) {
    %c0_i32 = arith.constant 0 : i32
    %c0_i32_0 = arith.constant 0 : i32
    return %arg0, %c0_i32 : i32, i32
  }
  func.func @transform_1(%arg0: i32) -> (i32, i32) {
    %c0_i32 = arith.constant 0 : i32
    %c0_i32_0 = arith.constant 0 : i32
    return %arg0, %c0_i32 : i32, i32
  }
  func.func @transform_2(%arg0: i32) -> (i32, i32) {
    %c0_i32 = arith.constant 0 : i32
    %c0_i32_0 = arith.constant 0 : i32
    %c0_i32_1 = arith.constant 0 : i32
    return %c0_i32, %c0_i32_0 : i32, i32
  }
  func.func @transform_3(%arg0: i32) -> (i32, i32) {
    %c0_i32 = arith.constant 0 : i32
    %c0_i32_0 = arith.constant 0 : i32
    %c0_i32_1 = arith.constant 0 : i32
    return %c0_i32, %c0_i32_0 : i32, i32
  }
  func.func @transform_4(%arg0: i32) -> (i32, i32) {
    %c0_i32 = arith.constant 0 : i32
    %c0_i32_0 = arith.constant 0 : i32
    return %arg0, %c0_i32 : i32, i32
  }
}

</mosaic_0001>

<llo_original>
// kernel: speaker_classifier_forward.1
$region0: #{speaker_classifier_forward.1}
  #allocation0 [shape = 'u32[]', space=smem, size = 0x4, offset = 0x4, fixed_abs, tag = 'smem constant byte address 0x4 - core index']
  #allocation1 [shape = 'u32[144,128]{1,0:T(1,128)}', space=vmem, size = 0x12000, scoped, tag = 'internal scratch']
  %s0 = inlined_call_operand.vmem [shape: f32[16,32], index: 0, kind: input, shape index: {}]
  %s1 = inlined_call_operand.vmem [shape: s32[16,1], index: 1, kind: input, shape index: {}]
  %s2 = inlined_call_operand.vmem [shape: f32[32,8], index: 2, kind: input, shape index: {}]
  %s3 = inlined_call_operand.vmem [shape: f32[1,8], index: 3, kind: input, shape index: {}]
  %s4 = inlined_call_operand.hbm [shape: f32[16,8], index: 4, kind: output, shape index: {}]
  %s5 = sld [smem:[#allocation0]]
  $region49: #{speaker_classifier_forward.1} parent=0
    _
  %s7 = ssub.s32 1, %s5
  %s8 = scalar_select 0, %s7, %s5
  $region1: #{speaker_classifier_forward.1} parent=0
    #allocation2 [shape = 'u8[8192]{0}', space=vmem, size = 0x2000, scoped, tag = 'output window, operand 0']
    #allocation3 [shape = 's32[2]{0}', space=sflag, size = 0x8, scoped, tag = 'scoped memory for speaker_classifier_forward.1']
    %9 = vsyncpa [#allocation3], 0
    %s10 = scalar_lea.sflag [#allocation3], 1
    %11 = vsyncpa %s10, 0
    loop: start=0, step=1, limit=4
    $region2: #{speaker_classifier_forward.1} parent=1 // loop_pre_header
      _
    $region3: #{speaker_classifier_forward.1} parent=1 // loop_header
      %s13 = sphi 0, %s17
      %p14 = scmp.ge.s32.totalorder %s13, 4
      %s23 = sphi 0, %s25
      %s26 = sphi 0, %s23
      %s27 = sphi 0, %s26
      %s43 = sphi 0, %s27
      %s49 = sphi 0, %s51
      %s52 = sphi 0, %s49
      %s53 = sphi 0, %s52
      %s69 = sphi 0, %s53
      %s73 = sphi 0, %s73
      %s75 = sphi 0, %s73
      %s76 = sphi 0, %s75
      %s90 = sphi 0, %s76
      %s94 = sphi 0, %s94
      %s96 = sphi 0, %s94
      %s97 = sphi 0, %s96
      %s111 = sphi 0, %s97
      %s117 = sphi 0, %s119
      %s120 = sphi 0, %s117
      %s121 = sphi 0, %s120
      %s137 = sphi 0, %s121
    $region4: #{speaker_classifier_forward.1} parent=1 // loop_header_branch
      %16 = sbr.rel (%p14) target = $region8
    $region5: #{speaker_classifier_forward.1} parent=1 // loop_body
      %s18 = ssub.s32 %s13, 1
      %s19 = ssub.s32 %s13, 2
      %s20 = sadd.s32 %s13, 1
      %s21 = ssub.s32 %s13, %s20
      %p22 = scmp.eq.s32.totalorder %s21, 0
      %s24 = sadd.s32 %s23, 1
      %s25 = scalar_select %p22, %s23, %s24
      %p28 = pneg %p22
      %p29 = scmp.eq.s32.totalorder %s13, 1
      %p30 = por %p28, %p29
      %p31 = scmp.ne.s32.totalorder %s23, %s26
      %p32 = scmp.eq.s32.totalorder %s13, 0
      %p33 = por %p31, %p32
      %p34 = scmp.ne.s32.totalorder %s23, %s26
      %p35 = scmp.eq.s32.totalorder %s18, 1
      %p36 = por %p34, %p35
      %p37 = scmp.ne.s32.totalorder %s26, %s27
      %p38 = scmp.eq.s32.totalorder %s18, 0
      %p39 = por %p37, %p38
      %p40 = scmp.ne.s32.totalorder %s26, %s27
      %p41 = scmp.eq.s32.totalorder %s19, 1
      %p42 = por %p40, %p41
      %p44 = scmp.ne.s32.totalorder %s27, %s43
      %p45 = scmp.eq.s32.totalorder %s19, 0
      %p46 = por %p44, %p45
      %s47 = ssub.s32 %s13, %s20
      %p48 = scmp.eq.s32.totalorder %s47, 0
      %s50 = sadd.s32 %s49, 1
      %s51 = scalar_select %p48, %s49, %s50
      %p54 = pneg %p48
      %p55 = scmp.eq.s32.totalorder %s13, 1
      %p56 = por %p54, %p55
      %p57 = scmp.ne.s32.totalorder %s49, %s52
      %p58 = scmp.eq.s32.totalorder %s13, 0
      %p59 = por %p57, %p58
      %p60 = scmp.ne.s32.totalorder %s49, %s52
      %p61 = scmp.eq.s32.totalorder %s18, 1
      %p62 = por %p60, %p61
      %p63 = scmp.ne.s32.totalorder %s52, %s53
      %p64 = scmp.eq.s32.totalorder %s18, 0
      %p65 = por %p63, %p64
      %p66 = scmp.ne.s32.totalorder %s52, %s53
      %p67 = scmp.eq.s32.totalorder %s19, 1
      %p68 = por %p66, %p67
      %p70 = scmp.ne.s32.totalorder %s53, %s69
      %p71 = scmp.eq.s32.totalorder %s19, 0
      %p72 = por %p70, %p71
      %s74 = sadd.s32 %s73, 1
      %p77 = scmp.eq.s32.totalorder %s13, 1
      %p78 = scmp.ne.s32.totalorder %s73, %s75
      %p79 = scmp.eq.s32.totalorder %s13, 0
      %p80 = por %p78, %p79
      %p81 = scmp.ne.s32.totalorder %s73, %s75
      %p82 = scmp.eq.s32.totalorder %s18, 1
      %p83 = por %p81, %p82
      %p84 = scmp.ne.s32.totalorder %s75, %s76
      %p85 = scmp.eq.s32.totalorder %s18, 0
      %p86 = por %p84, %p85
      %p87 = scmp.ne.s32.totalorder %s75, %s76
      %p88 = scmp.eq.s32.totalorder %s19, 1
      %p89 = por %p87, %p88
      %p91 = scmp.ne.s32.totalorder %s76, %s90
      %p92 = scmp.eq.s32.totalorder %s19, 0
      %p93 = por %p91, %p92
      %s95 = sadd.s32 %s94, 1
      %p98 = scmp.eq.s32.totalorder %s13, 1
      %p99 = scmp.ne.s32.totalorder %s94, %s96
      %p100 = scmp.eq.s32.totalorder %s13, 0
      %p101 = por %p99, %p100
      %p102 = scmp.ne.s32.totalorder %s94, %s96
      %p103 = scmp.eq.s32.totalorder %s18, 1
      %p104 = por %p102, %p103
      %p105 = scmp.ne.s32.totalorder %s96, %s97
      %p106 = scmp.eq.s32.totalorder %s18, 0
      %p107 = por %p105, %p106
      %p108 = scmp.ne.s32.totalorder %s96, %s97
      %p109 = scmp.eq.s32.totalorder %s19, 1
      %p110 = por %p108, %p109
      %p112 = scmp.ne.s32.totalorder %s97, %s111
      %p113 = scmp.eq.s32.totalorder %s19, 0
      %p114 = por %p112, %p113
      %s115 = ssub.s32 %s13, %s20
      %p116 = scmp.eq.s32.totalorder %s115, 0
      %s118 = sadd.s32 %s117, 1
      %s119 = scalar_select %p116, %s117, %s118
      %p122 = pneg %p116
      %p123 = scmp.eq.s32.totalorder %s13, 1
      %p124 = por %p122, %p123
      %p125 = scmp.ne.s32.totalorder %s117, %s120
      %p126 = scmp.eq.s32.totalorder %s13, 0
      %p127 = por %p125, %p126
      %p128 = scmp.ne.s32.totalorder %s117, %s120
      %p129 = scmp.eq.s32.totalorder %s18, 1
      %p130 = por %p128, %p129
      %p131 = scmp.ne.s32.totalorder %s120, %s121
      %p132 = scmp.eq.s32.totalorder %s18, 0
      %p133 = por %p131, %p132
      %p134 = scmp.ne.s32.totalorder %s120, %s121
      %p135 = scmp.eq.s32.totalorder %s19, 1
      %p136 = por %p134, %p135
      %p138 = scmp.ne.s32.totalorder %s121, %s137
      %p139 = scmp.eq.s32.totalorder %s19, 0
      %p140 = por %p138, %p139
      %p141 = scmp.le.s32.totalorder 1, %s13
      %p142 = scmp.lt.s32.totalorder %s13, 3
      %p143 = pnand %p141, %p142
      %p144 = pneg %p143
      // Predicated region
      $region9: #{speaker_classifier_forward.1} parent=5 // pred_check
        _
      $region10: #{speaker_classifier_forward.1} parent=5 // pred_check_branch
        %146 = sbr.rel (%p143) target = $region12
      $region11: #{speaker_classifier_forward.1} parent=5 // pred_region
        %s147 = ssub.s32 %s13, 1
        // Predicated region
        $region13: #{speaker_classifier_forward.1} parent=11 // pred_check
          %p148 = pneg %p86
        $region14: #{speaker_classifier_forward.1} parent=11 // pred_check_branch
          %150 = sbr.rel (%p148) target = $region16
        $region15: #{speaker_classifier_forward.1} parent=11 // pred_region
          _
        $region16: #{speaker_classifier_forward.1} parent=11 // pred_fallthru
          _
        // Predicated region
        $region17: #{speaker_classifier_forward.1} parent=11 // pred_check
          %p151 = pneg %p107
        $region18: #{speaker_classifier_forward.1} parent=11 // pred_check_branch
          %153 = sbr.rel (%p151) target = $region20
        $region19: #{speaker_classifier_forward.1} parent=11 // pred_region
          _
        $region20: #{speaker_classifier_forward.1} parent=11 // pred_fallthru
          _
      $region12: #{speaker_classifier_forward.1} parent=5 // pred_fallthru
        _
      %p154 = scmp.lt.s32.totalorder %s13, 2
      // Predicated region
      $region21: #{speaker_classifier_forward.1} parent=5 // pred_check
        %p155 = pneg %p154
      $region22: #{speaker_classifier_forward.1} parent=5 // pred_check_branch
        %157 = sbr.rel (%p155) target = $region24
      $region23: #{speaker_classifier_forward.1} parent=5 // pred_region
        // Predicated region
        $region25: #{speaker_classifier_forward.1} parent=23 // pred_check
          %p158 = pneg %p33
        $region26: #{speaker_classifier_forward.1} parent=23 // pred_check_branch
          %160 = sbr.rel (%p158) target = $region28
        $region27: #{speaker_classifier_forward.1} parent=23 // pred_region
          %p161 = scmp.lt.s32.totalorder %s13, 1
          %s162 = scalar_select %p161, %s13, 1
          %s163 = smul.addr %s162, 8
          %s164 = scalar_lea.vmem %s0, %s163
        $region28: #{speaker_classifier_forward.1} parent=23 // pred_fallthru
          _
        // Predicated region
        $region29: #{speaker_classifier_forward.1} parent=23 // pred_check
          %p165 = pneg %p59
        $region30: #{speaker_classifier_forward.1} parent=23 // pred_check_branch
          %167 = sbr.rel (%p165) target = $region32
        $region31: #{speaker_classifier_forward.1} parent=23 // pred_region
          %p168 = scmp.lt.s32.totalorder %s13, 1
          %s169 = scalar_select %p168, %s13, 1
          %s170 = smul.addr %s169, 8
          %s171 = scalar_lea.vmem %s1, %s170
        $region32: #{speaker_classifier_forward.1} parent=23 // pred_fallthru
          _
      $region24: #{speaker_classifier_forward.1} parent=5 // pred_fallthru
        _
      %p172 = scmp.le.s32.totalorder 1, %s13
      %p173 = scmp.lt.s32.totalorder %s13, 3
      %p174 = pnand %p172, %p173
      %p175 = pneg %p174
      // Predicated region
      $region33: #{speaker_classifier_forward.1} parent=5 // pred_check
        _
      $region34: #{speaker_classifier_forward.1} parent=5 // pred_check_branch
        %177 = sbr.rel (%p174) target = $region36
      $region35: #{speaker_classifier_forward.1} parent=5 // pred_region
        %s178 = ssub.s32 %s13, 1
        %p179 = scmp.lt.s32.totalorder %s18, 1
        %s180 = scalar_select %p179, %s18, 1
        %s181 = smul.addr %s180, 8
        %s182 = scalar_lea.vmem %s0, %s181
        %p183 = pneg %p39
        %p184 = pneg %p36
        %p185 = scmp.lt.s32.totalorder %s18, 1
        %s186 = scalar_select %p185, %s18, 1
        %s187 = smul.addr %s186, 8
        %s188 = scalar_lea.vmem %s1, %s187
        %p189 = pneg %p65
        %p190 = pneg %p62
        %p191 = pneg %p86
        %p192 = pneg %p83
        %p193 = pneg %p107
        %p194 = pneg %p104
        %p195 = pneg %p133
        %p196 = pneg %p130
        %s197 = sand.u32 %s120, 1
        %s198 = scalar_lea.sflag [#allocation3], %s197
        %s199 = sand.u32 %s120, 1
        %s200 = smul.addr %s199, 8
        %s201 = scalar_lea.vmem [#allocation2], %s200
        %p202 = scmp.lt.s32.totalorder %s18, 1
        %s203 = scalar_select %p202, %s18, 1
        %s204 = smul.addr %s203, 8
        %s205 = scalar_lea.vmem %s0, %s204
        %p206 = scmp.lt.s32.totalorder %s18, 1
        %s207 = scalar_select %p206, %s18, 1
        %s208 = smul.addr %s207, 8
        %s209 = scalar_lea.vmem %s1, %s208
        %v210 = vld [vmem:[%s205] sm:$0xff]
        %v211 = vld [vmem:[%s2] sm:$0xff]
        %v212 = vld [vmem:[%s2 + $0x8] sm:$0xff]
        %v213 = vld [vmem:[%s2 + $0x10] sm:$0xff]
        %v214 = vld [vmem:[%s2 + $0x18] sm:$0xff]
        %v215 = vld [vmem:[%s3] sm:$0x1]
        %v217 = vlaneseq
        %v218 = vshrl.u32 %v217, 7
        %v219 = vsub.s32 0, %v218
        %v220 = vrot.slane %v215, %v219
        %vm222 = vcmask 261120
        %v224 = vsel %vm222, %v210, 0
        %226 = vmatprep.subr.mxu0 0.0
        %227 = vmatpush1.msra.mxu0 %v211
        %228 = vmatprep.subr.mxu0 0.0
        %229 = vmatpush1.msra.mxu0 %v212
        %230 = vmatprep.subr.mxu0 0.0
        %231 = vmatpush1.msra.mxu0 %v213
        %232 = vmatprep.subr.mxu0 0.0
        %233 = vmatpush1.msra.mxu0 %v214
        %234 = vmatprep.subr.mxu0 0.0
        %235 = vmatpush1.msra.mxu0 0.0
        %236 = vmatprep.subr.mxu0 0.0
        %237 = vmatpush1.msra.mxu0 0.0
        %238 = vmatprep.subr.mxu0 0.0
        %239 = vmatpush1.msra.mxu0 0.0
        %240 = vmatprep.subr.mxu0 0.0
        %241 = vmatpush1.msra.mxu0 0.0
        %242 = vmatprep.subr.mxu0 0.0
        %243 = vmatpush1.msra.mxu0 0.0
        %244 = vmatprep.subr.mxu0 0.0
        %245 = vmatpush1.msra.mxu0 0.0
        %246 = vmatprep.subr.mxu0 0.0
        %247 = vmatpush1.msra.mxu0 0.0
        %248 = vmatprep.subr.mxu0 0.0
        %249 = vmatpush1.msra.mxu0 0.0
        %250 = vmatprep.subr.mxu0 0.0
        %251 = vmatpush1.msra.mxu0 0.0
        %252 = vmatprep.subr.mxu0 0.0
        %253 = vmatpush1.msra.mxu0 0.0
        %254 = vmatprep.subr.mxu0 0.0
        %255 = vmatpush1.msra.mxu0 0.0
        %256 = vmatprep.subr.mxu0 0.0
        %257 = vmatpush1.msra.mxu0 0.0
        %258 = vmatprep.subr.mxu0 0.0
        %259 = vmatpush1.msra.mxu0 0.0
        %260 = vmatprep.subr.mxu0 0.0
        %261 = vmatpush1.msra.mxu0 0.0
        %262 = vmatprep.subr.mxu0 0.0
        %263 = vmatpush1.msra.mxu0 0.0
        %264 = vmatprep.subr.mxu0 0.0
        %265 = vmatpush1.msra.mxu0 0.0
        %266 = vmatprep.subr.mxu0 0.0
        %267 = vmatpush1.msra.mxu0 0.0
        %268 = vmatprep.subr.mxu0 0.0
        %269 = vmatpush1.msra.mxu0 0.0
        %270 = vmatprep.subr.mxu0 0.0
        %271 = vmatpush1.msra.mxu0 0.0
        %272 = vmatprep.subr.mxu0 0.0
        %273 = vmatpush1.msra.mxu0 0.0
        %274 = vmatprep.subr.mxu0 0.0
        %275 = vmatpush1.msra.mxu0 0.0
        %276 = vmatprep.subr.mxu0 0.0
        %277 = vmatpush1.msra.mxu0 0.0
        %278 = vmatprep.subr.mxu0 0.0
        %279 = vmatpush1.msra.mxu0 0.0
        %280 = vmatprep.subr.mxu0 0.0
        %281 = vmatpush1.msra.mxu0 0.0
        %282 = vmatprep.subr.mxu0 0.0
        %283 = vmatpush1.msra.mxu0 0.0
        %284 = vmatprep.subr.mxu0 0.0
        %285 = vmatpush1.msra.mxu0 0.0
        %286 = vmatprep.subr.mxu0 0.0
        %287 = vmatpush1.msra.mxu0 0.0
        %288 = vmatprep.subr.mxu0 0.0
        %289 = vmatpush1.msra.mxu0 0.0
        %290 = vmatprep.mubr.f32.mxu0 0.0
        %291 = vmatmul.mubr.f32.gmra.mrb[0].mxu0 %v224
        %v292 = vpop.f32.mrb[0].mxu0
        %v293 = vadd.f32 %v220, %v292
        %v294 = vpop.f32.mrb[0].mxu0
        %295 = vdwg.mxu0
        %v296 = vld [vmem:[%s209] sm:$0xff]
        %vm297 = vcmp.gt.s32.totalorder %v296, 0
        %v298 = vsel %vm297, 1, 0
        %299 = vset.pattern.permute.xlu0 0
        %300 = vperm.xlu0 %299, %v298
        %v301 = vpop.permute.xlu0 %300
        %vm302 = vcmp.eq.s32.totalorder %v301, 1
        %v303 = vsel %vm302, %v293, 0.0
        %vm304 = vcmask 64512
        %305 = vst.msk [vmem:[%s201] sm:$0xff] %vm304, %v303
        %s306 = sand.u32 %s120, 1
        %s307 = scalar_lea.sflag [#allocation3], %s306
        %s308 = sand.u32 %s120, 1
        %s309 = smul.addr %s308, 8
        %s310 = scalar_lea.vmem [#allocation2], %s309
        // Predicated region
        $region37: #{speaker_classifier_forward.1} parent=35 // pred_check
          %p311 = pneg %p130
        $region38: #{speaker_classifier_forward.1} parent=35 // pred_check_branch
          %313 = sbr.rel (%p311) target = $region40
        $region39: #{speaker_classifier_forward.1} parent=35 // pred_region
          %s315 = ssub.s32 128, 128
          %316 = vsyncadd %s307, %s315
          %s317 = smul.addr %s18, 128
          %s318 = scalar_lea.hbm %s4, %s317
          %s320 = sshll.u32 %s310, 4
          %s321 = int_to_ptr.vmem [resolvable:$true] %s320
          %323 = dma.vmem_to_hbm [thread:$0]  %s321, 128, %s318, %s307
        $region40: #{speaker_classifier_forward.1} parent=35 // pred_fallthru
          _
      $region36: #{speaker_classifier_forward.1} parent=5 // pred_fallthru
        _
      %p324 = scmp.le.s32.totalorder 2, %s13
      // Predicated region
      $region41: #{speaker_classifier_forward.1} parent=5 // pred_check
        %p325 = pneg %p324
      $region42: #{speaker_classifier_forward.1} parent=5 // pred_check_branch
        %327 = sbr.rel (%p325) target = $region44
      $region43: #{speaker_classifier_forward.1} parent=5 // pred_region
        %s328 = ssub.s32 %s13, 2
        // Predicated region
        $region45: #{speaker_classifier_forward.1} parent=43 // pred_check
          %p329 = pneg %p136
        $region46: #{speaker_classifier_forward.1} parent=43 // pred_check_branch
          %331 = sbr.rel (%p329) target = $region48
        $region47: #{speaker_classifier_forward.1} parent=43 // pred_region
          %s332 = sand.u32 %s121, 1
          %s333 = scalar_lea.sflag [#allocation3], %s332
          %s334 = sand.u32 %s121, 1
          %s335 = smul.addr %s334, 8
          %s336 = scalar_lea.vmem [#allocation2], %s335
          %337 = dma.done %s333, 128
        $region48: #{speaker_classifier_forward.1} parent=43 // pred_fallthru
          _
      $region44: #{speaker_classifier_forward.1} parent=5 // pred_fallthru
        _
    $region6: #{speaker_classifier_forward.1} parent=1 // loop_footer
      %s17 = sadd.s32 1, %s13
    $region7: #{speaker_classifier_forward.1} parent=1 // loop_footer_branch
      %12 = sbr.rel target = $region3
    $region8: #{speaker_classifier_forward.1} parent=1 // loop_exit
      _
    %338 = vsyncpa [#allocation3], 1
    %s339 = scalar_lea.sflag [#allocation3], 1
    %340 = vsyncpa %s339, 1

</llo_original>
